<compile_context>
chip_gen: v5e
topology: v5e:2x2
jax: 0.10.0
libtpu: 0.0.40
codegen_flags: <defaults>
</compile_context>

<pallas_src>
import jax
import jax.numpy as jnp
from jax.experimental import pallas as pl
from jax.experimental.pallas import tpu as pltpu


def _cpe_kernel(x_ref, params_ref, o_ref):
    # x_ref / o_ref: (C_BLK, P*S) lane-dense tile; rows are contexts.
    # params_ref:    (2, P*S) resident: row 0 = p*Wp + bp + bc, row 1 = Wc tiled.
    c_blk = o_ref.shape[0]

    patch_row = params_ref[0:1, :]                    # (1, P*S) f32
    wc_row = params_ref[1:2, :]                       # (1, P*S) f32

    # Context index of each row of this block (exact int32 math, cast once).
    base = pl.program_id(0) * c_blk
    n_col = (base + jax.lax.broadcasted_iota(jnp.int32, (c_blk, 1), 0)
             ).astype(jnp.float32)                    # (C_BLK, 1)

    pe = patch_row + n_col * wc_row                   # (C_BLK, P*S) f32
    o_ref[...] = (x_ref[...].astype(jnp.float32) + pe).astype(o_ref.dtype)


def _vmem_capacity_bytes():
    """Physical VMEM per TensorCore (v5e/v6e: 128 MiB, v7x: 64 MiB)."""
    try:
        return int(pltpu.get_tpu_info().vmem_capacity_bytes)
    except Exception:
        return 64 << 20  # conservative (v7x) fallback


def _tile_budget_bytes(vmem_cap):
    """Per-tile byte budget.

    ~1–2 MiB lane-dense tiles already reach ~85% of the HBM roofline; there is
    no data reuse in this kernel, so we do NOT try to fill VMEM.  Scale mildly
    with the generation's VMEM so v7x (64 MiB) gets ~1 MiB and v5e/v6e ~2 MiB.
    """
    return max(512 << 10, min(2 << 20, vmem_cap // 64))


def _choose_context_block(n_ctx, row_elems, itemsize, target_bytes):
    """Rows (contexts) per grid step.

    * Rounded to the dtype's sublane packing (8 f32 / 16 bf16 / 32 int8) so
      stores stay unmasked full-vreg.
    * Guarantees >= 2 grid steps whenever n_ctx allows a clean split, so v7x's
      two TensorCores both participate and DMA/compute overlap exists.
    * Ragged tails are handled by the caller with a cdiv grid (Pallas masks
      OOB rows) — never falls back to one giant tile.
    """
    pack = max(8, 32 // itemsize)          # sublane packing in rows
    if n_ctx <= pack:
        return n_ctx                        # single full-extent block (exact dim)

    row_bytes = row_elems * itemsize
    rows = max(target_bytes // row_bytes, pack)
    rows = (rows // pack) * pack

    # Largest pack-multiple strictly below n_ctx ⇒ at least two grid steps.
    max_rows_two_steps = ((n_ctx - 1) // pack) * pack
    rows = min(rows, max_rows_two_steps)
    return max(rows, pack)


def context_positional_encoding(x, wp, bp, wc, bc, *, num_context, num_patches):
    """x: (1, num_context * num_patches, S); wp/wc: (S, 1); bp/bc: (S,)."""
    one, NP, S = x.shape
    assert one == 1 and NP == num_context * num_patches
    N, P = num_context, num_patches
    PS = P * S
    # NOTE: when P*S is a multiple of 128 (true here: 256), stores are fully
    # lane-dense; otherwise the kernel is still correct (full-extent last dim)
    # but stores become masked partial vst.

    # Hoist the patch-affine term (and both biases) into a tiny resident table:
    #   patch_row[0, p*S + s] = p * Wp[s,0] + bp[s] + bc[s]
    p_idx = jnp.arange(P, dtype=jnp.float32)[:, None]                      # (P, 1)
    wp_r = wp.reshape(1, S).astype(jnp.float32)
    bias = (bp.reshape(1, S) + bc.reshape(1, S)).astype(jnp.float32)
    patch_row = (p_idx * wp_r + bias).reshape(1, PS)                       # (1, P*S)
    #   wc_row[0, p*S + s] = Wc[s,0]   (same for every p)
    wc_row = jnp.broadcast_to(
        wc.reshape(1, S).astype(jnp.float32), (P, S)).reshape(1, PS)       # (1, P*S)
    params = jnp.concatenate([patch_row, wc_row], axis=0)                  # (2, P*S)

    # Lane-dense view: one row per context, P*S lanes.
    x2 = x.reshape(N, PS)
    itemsize = x2.dtype.itemsize

    vmem_cap = _vmem_capacity_bytes()
    c_blk = _choose_context_block(N, PS, itemsize,
                                  target_bytes=_tile_budget_bytes(vmem_cap))
    grid = (pl.cdiv(N, c_blk),)            # ragged last block is masked by Pallas

    # Scoped-VMEM limit: in + out double-buffered (4 tiles), params (tiny),
    # plus headroom for internal scratch; capped well below physical VMEM.
    tile_bytes = c_blk * PS * itemsize
    params_bytes = 2 * PS * 4
    vmem_limit = min(vmem_cap // 2,
                     max(4 * tile_bytes + 4 * params_bytes + (2 << 20), 8 << 20))

    out = pl.pallas_call(
        _cpe_kernel,
        out_shape=jax.ShapeDtypeStruct((N, PS), x.dtype),
        grid_spec=pl.GridSpec(
            grid=grid,
            in_specs=[
                pl.BlockSpec((c_blk, PS), lambda i: (i, 0)),   # x tile
                pl.BlockSpec((2, PS), lambda i: (0, 0)),       # resident params
            ],
            out_specs=pl.BlockSpec((c_blk, PS), lambda i: (i, 0)),
        ),
        # Pure in-place add: alias x2 to the output (no extra HBM allocation
        # / copy when the caller donates x).
        input_output_aliases={0: 0},
        compiler_params=pltpu.CompilerParams(
            dimension_semantics=("parallel",),
            vmem_limit_bytes=int(vmem_limit)),
        cost_estimate=pl.CostEstimate(
            flops=3 * N * PS,
            transcendentals=0,
            bytes_accessed=2 * N * PS * itemsize),
    )(x2, params)

    return out.reshape(one, NP, S)


def _reference(x, wp, bp, wc, bc, *, num_context, num_patches):
    """Pure-JAX replica of the PyTorch forward for verification."""
    P, N = num_patches, num_context
    p_in = jnp.arange(P, dtype=jnp.float32)[:, None]          # (P, 1)
    n_in = jnp.arange(N, dtype=jnp.float32)[:, None]          # (N, 1)
    patch_pos = p_in @ wp.T + bp                               # (P, S)
    ctx_pos = n_in @ wc.T + bc                                 # (N, S)
    pe = patch_pos[None, :, :] + ctx_pos[:, None, :]           # (N, P, S)
    return x + pe.reshape(1, N * P, wp.shape[0])


if __name__ == "__main__":
    # Module hyperparameters (small, consistent with the forward pass)
    num_context_patches = 4          # -> P = 16 patch positions
    patch_size = 2
    num_channels = 4                 # -> S = patch_size**2 * num_channels = 16
    num_context = 2                  # -> N = 2

    P = num_context_patches ** 2
    S = patch_size ** 2 * num_channels
    N = num_context

    key = jax.random.PRNGKey(0)
    kx, kwp, kbp, kwc, kbc = jax.random.split(key, 5)

    # Linear(1, S): weight (S, 1), bias (S,)
    wp = jax.random.normal(kwp, (S, 1), dtype=jnp.float32) * 0.1
    bp = jax.random.normal(kbp, (S,), dtype=jnp.float32) * 0.1
    wc = jax.random.normal(kwc, (S, 1), dtype=jnp.float32) * 0.1
    bc = jax.random.normal(kbc, (S,), dtype=jnp.float32) * 0.1

    x = jax.random.normal(kx, (1, N * P, S), dtype=jnp.float32)

    out = context_positional_encoding(
        x, wp, bp, wc, bc, num_context=N, num_patches=P)
    out = jax.block_until_ready(out)

    ref = _reference(x, wp, bp, wc, bc, num_context=N, num_patches=P)

    assert out.shape == x.shape, (out.shape, x.shape)
    assert jnp.allclose(out, ref, atol=1e-5, rtol=1e-5), \
        float(jnp.max(jnp.abs(out - ref)))

    print("KERNEL_OK")
</pallas_src>

<mosaic_0001>
module attributes {stable_mosaic.version = 11 : i64} {
  func.func @_cpe_kernel(%arg0: i32, %arg1: memref<2x256xf32, #tpu.memory_space<vmem>>, %arg2: memref<2x256xf32, #tpu.memory_space<vmem>>, %arg3: memref<2x256xf32, #tpu.memory_space<vmem>>) attributes {dimension_semantics = [#tpu.dimension_semantics<parallel>], iteration_bounds = array<i64: 1>, scalar_prefetch = 0 : i64, scratch_operands = 0 : i64, tpu.core_type = #tpu.core_type<tc>, window_params = [{transform_indices = @transform_0, window_bounds = array<i64: 2, 256>}, {pipeline_mode = #tpu.pipeline_mode<synchronous>, transform_indices = @transform_1, window_bounds = array<i64: 2, 256>}, {transform_indices = @transform_2, window_bounds = array<i64: 2, 256>}]} {
    %c0 = arith.constant 0 : index
    %c0_0 = arith.constant 0 : index
    %0 = vector.load %arg2[%c0, %c0_0] : memref<2x256xf32, #tpu.memory_space<vmem>>, vector<1x256xf32>
    %c1 = arith.constant 1 : index
    %c0_1 = arith.constant 0 : index
    %1 = vector.load %arg2[%c1, %c0_1] : memref<2x256xf32, #tpu.memory_space<vmem>>, vector<1x256xf32>
    %c2_i32 = arith.constant 2 : i32
    %2 = arith.muli %arg0, %c2_i32 : i32
    %3 = tpu.iota {dimensions = array<i32: 0>} : vector<2x1xi32>
    %4 = vector.broadcast %2 : i32 to vector<2x1xi32>
    %5 = arith.addi %4, %3 : vector<2x1xi32>
    %6 = arith.sitofp %5 : vector<2x1xi32> to vector<2x1xf32>
    %7 = vector.broadcast %6 : vector<2x1xf32> to vector<2x256xf32>
    %8 = vector.broadcast %1 : vector<1x256xf32> to vector<2x256xf32>
    %9 = arith.mulf %7, %8 : vector<2x256xf32>
    %10 = vector.broadcast %0 : vector<1x256xf32> to vector<2x256xf32>
    %11 = arith.addf %10, %9 : vector<2x256xf32>
    %c0_2 = arith.constant 0 : index
    %c0_3 = arith.constant 0 : index
    %12 = vector.load %arg1[%c0_2, %c0_3] : memref<2x256xf32, #tpu.memory_space<vmem>>, vector<2x256xf32>
    %13 = arith.addf %12, %11 : vector<2x256xf32>
    %c0_4 = arith.constant 0 : index
    %c0_5 = arith.constant 0 : index
    %14 = vector.load %arg3[%c0_4, %c0_5] : memref<2x256xf32, #tpu.memory_space<vmem>>, vector<2x256xf32>
    tpu.vector_store %arg3[%c0_4, %c0_5], %13 {strides = array<i32>} : memref<2x256xf32, #tpu.memory_space<vmem>>, vector<2x256xf32>,
    return
  }
  func.func @transform_0(%arg0: i32) -> (i32, i32) {
    %c0_i32 = arith.constant 0 : i32
    %c0_i32_0 = arith.constant 0 : i32
    return %arg0, %c0_i32 : i32, i32
  }
  func.func @transform_1(%arg0: i32) -> (i32, i32) {
    %c0_i32 = arith.constant 0 : i32
    %c0_i32_0 = arith.constant 0 : i32
    %c0_i32_1 = arith.constant 0 : i32
    return %c0_i32, %c0_i32_0 : i32, i32
  }
  func.func @transform_2(%arg0: i32) -> (i32, i32) {
    %c0_i32 = arith.constant 0 : i32
    %c0_i32_0 = arith.constant 0 : i32
    return %arg0, %c0_i32 : i32, i32
  }
}

</mosaic_0001>

<llo_original>
// kernel: tpu_custom_call.1
$region0: #{tpu_custom_call.1}
  #allocation0 [shape = 'u32[]', space=smem, size = 0x4, offset = 0x4, fixed_abs, tag = 'smem constant byte address 0x4 - core index']
  #allocation1 [shape = 'u32[72,128]{1,0:T(1,128)}', space=vmem, size = 0x9000, scoped, tag = 'internal scratch']
  %s0 = inlined_call_operand.hbm [shape: f32[2,256], index: 0, kind: input, shape index: {}, may-alias: {0,2}]
  %s1 = inlined_call_operand.vmem [shape: f32[2,256], index: 1, kind: input, shape index: {}]
  %s2 = inlined_call_operand.hbm [shape: f32[2,256], index: 2, kind: output, shape index: {}, may-alias: {0,2}]
  %s3 = sld [smem:[#allocation0]]
  $region22: #{tpu_custom_call.1} parent=0
    _
  %s5 = ssub.s32 1, %s3
  %s6 = scalar_select 0, %s5, %s3
  $region1: #{tpu_custom_call.1} parent=0
    #allocation2 [shape = 'u8[2048]{0}', space=vmem, size = 0x800, scoped, tag = 'input window, operand 0, single buffered']
    #allocation3 [shape = 's32[1]{0}', space=sflag, size = 0x4, scoped, tag = 'scoped memory for tpu_custom_call.1']
    #allocation4 [shape = 's32[1]{0}', space=sflag, size = 0x4, scoped, tag = 'scoped memory for tpu_custom_call.1']
    #allocation5 [shape = 'u8[2048]{0}', space=vmem, size = 0x800, scoped, tag = 'output window, operand 0, single buffered']
    %7 = vsyncpa [#allocation3], 0
    %8 = vsyncpa [#allocation4], 0
    // Predicated region
    $region2: #{tpu_custom_call.1} parent=1 // pred_check
      _
    $region3: #{tpu_custom_call.1} parent=1 // pred_check_branch
      %10 = sbr.rel (0) target = $region5
    $region4: #{tpu_custom_call.1} parent=1 // pred_region
      %12 = vsyncadd [#allocation3], 0
      %s14 = sshll.u32 %s0, 4
      %s15 = int_to_ptr.hbm [resolvable:$true] %s14
      %s16 = sshll.u32 [#allocation2], 4
      %s17 = int_to_ptr.vmem [resolvable:$true] %s16
      %19 = dma.hbm_to_vmem [thread:$0]  %s15, 64, %s17, [#allocation3]
    $region5: #{tpu_custom_call.1} parent=1 // pred_fallthru
      _
    // Predicated region
    $region6: #{tpu_custom_call.1} parent=1 // pred_check
      _
    $region7: #{tpu_custom_call.1} parent=1 // pred_check_branch
      %21 = sbr.rel (0) target = $region9
    $region8: #{tpu_custom_call.1} parent=1 // pred_region
      _
    $region9: #{tpu_custom_call.1} parent=1 // pred_fallthru
      _
    // Predicated region
    $region10: #{tpu_custom_call.1} parent=1 // pred_check
      _
    $region11: #{tpu_custom_call.1} parent=1 // pred_check_branch
      %23 = sbr.rel (0) target = $region13
    $region12: #{tpu_custom_call.1} parent=1 // pred_region
      %25 = dma.done [#allocation3], 64
    $region13: #{tpu_custom_call.1} parent=1 // pred_fallthru
      _
    %v26 = vld [vmem:[%s1] ss:$2 sm:$0x3]
    %s27 = scalar_lea.vmem %s1, 1
    %v28 = vld [vmem:[%s27] ss:$2 sm:$0x3]
    %s29 = smul.u32 0, 2
    %v30 = vlaneseq
    %v31 = vshrl.u32 %v30, 7
    %v32 = vstv %s29
    %v33 = vadd.s32 %v32, %v31
    %v34 = vcvt.s32.f32 %v33
    %v36 = vperm.slane %v28, 0
    %v37 = vperm.slane %v28, 1
    %v40 = vmul.f32 %v34, %v36
    %v41 = vmul.f32 %v34, %v37
    %v43 = vperm.slane %v26, 0
    %v44 = vperm.slane %v26, 1
    %v47 = vadd.f32 %v43, %v40
    %v48 = vadd.f32 %v44, %v41
    %v49 = vld [vmem:[#allocation2] sm:$0xf]
    %v52 = vrot.slane %v48, 6
    %vm53 = vcmask 1041408
    %v54 = vsel %vm53, %v47, %v52
    %v56 = vadd.f32 %v49, %v54
    %57 = vst [vmem:[#allocation5] sm:$0xf] %v56
    // Predicated region
    $region14: #{tpu_custom_call.1} parent=1 // pred_check
      _
    $region15: #{tpu_custom_call.1} parent=1 // pred_check_branch
      %59 = sbr.rel (0) target = $region17
    $region16: #{tpu_custom_call.1} parent=1 // pred_region
      %61 = vsyncadd [#allocation4], 0
      %s63 = sshll.u32 [#allocation5], 4
      %s64 = int_to_ptr.vmem [resolvable:$true] %s63
      %s65 = sshll.u32 %s2, 4
      %s66 = int_to_ptr.hbm [resolvable:$true] %s65
      %68 = dma.vmem_to_hbm [thread:$0]  %s64, 64, %s66, [#allocation4]
    $region17: #{tpu_custom_call.1} parent=1 // pred_fallthru
      _
    // Predicated region
    $region18: #{tpu_custom_call.1} parent=1 // pred_check
      _
    $region19: #{tpu_custom_call.1} parent=1 // pred_check_branch
      %70 = sbr.rel (0) target = $region21
    $region20: #{tpu_custom_call.1} parent=1 // pred_region
      %72 = dma.done [#allocation4], 64
    $region21: #{tpu_custom_call.1} parent=1 // pred_fallthru
      _
    %73 = vsyncpa [#allocation3], 1
    %74 = vsyncpa [#allocation4], 1

</llo_original>
